<compile_context>
chip_gen: v5e
topology: v5e:2x2
jax: 0.10.0
libtpu: 0.0.40
codegen_flags: <defaults>
</compile_context>

<pallas_src>
import jax
import jax.numpy as jnp
from jax.experimental import pallas as pl
from jax.experimental.pallas import tpu as pltpu

EPS = 1e-5   # BatchNorm1d default eps


def superhealth_kernel(x_ref,
                       w1_ref, b1_ref,
                       w2_ref, b2_ref,
                       w3_ref, b3_ref,
                       w4_ref, b4_ref,
                       o_ref):
    # Transposed (features, batch) layout everywhere: batch is the lane (last) dim.
    mm_dtype = w2_ref.dtype                      # bf16 by default (f32 option for v5e)

    x = x_ref[...].astype(jnp.float32)           # (4, bt)
    w1 = w1_ref[...]                             # (128, 4) f32
    # Layer 1 (fc1 + bn1 folded): K=4 contraction done on the VPU as 4 broadcast FMAs.
    h = b1_ref[...] + w1[:, 0:1] * x[0:1, :]     # (128, bt) f32
    for k in range(1, 4):                        # static unroll, 3 more FMAs
        h = h + w1[:, k:k + 1] * x[k:k + 1, :]
    h = jnp.maximum(h, 0.0).astype(mm_dtype)     # relu (dropout = identity in eval)

    # Layer 2 (fc2 + bn2 folded) on the MXU: (64,128) @ (128,bt)
    h = jnp.dot(w2_ref[...], h, preferred_element_type=jnp.float32)
    h = jnp.maximum(h + b2_ref[...], 0.0).astype(mm_dtype)          # (64, bt)

    # Layer 3 (fc3 + bn3 folded): (32,64) @ (64,bt)
    h = jnp.dot(w3_ref[...], h, preferred_element_type=jnp.float32)
    h = jnp.maximum(h + b3_ref[...], 0.0).astype(mm_dtype)          # (32, bt)

    # Layer 4 (fc4): (4,32) @ (32,bt)
    y = jnp.dot(w4_ref[...], h, preferred_element_type=jnp.float32)  # (4, bt)
    o_ref[...] = (y + b4_ref[...]).astype(o_ref.dtype)


def _num_tensorcores():
    """Best-effort TensorCores-per-chip (2 on v7x, else 1)."""
    try:
        info = pltpu.get_tpu_info()
        for attr in ("num_cores", "core_count", "num_tensorcores"):
            n = getattr(info, attr, None)
            if n:
                return int(n)
    except Exception:
        pass
    return 1


def _pick_tile(B, batch_tile, num_cores):
    """Largest multiple of 128 that divides B and is <= the (core-aware) cap."""
    cap = max(128, min(batch_tile, B))
    if num_cores > 1 and B >= num_cores * 128:
        # Only split the batch across grid steps when there are >=2 TCs to use them.
        cap = min(cap, max(128, B // num_cores))
    cap = max(128, (cap // 128) * 128)
    bt = 128
    for cand in range(128, cap + 1, 128):
        if B % cand == 0:
            bt = cand
    return bt


def superhealth_forward_t(x_t, kernel_params, *, batch_tile=4096):
    """Canonical fast path.  x_t: (4, B) activations in (features, batch) layout
    (any float dtype; bf16 recommended).  Returns (4, B) float32."""
    D, B = x_t.shape
    assert D == 4
    w1, b1, w2, b2, w3, b3, w4, b4 = kernel_params

    Bp = ((B + 127) // 128) * 128                 # lane-dense padding of the batch
    if Bp != B:
        x_t = jnp.pad(x_t, ((0, 0), (0, Bp - B)))

    bt = _pick_tile(Bp, batch_tile, _num_tensorcores())
    grid = (Bp // bt,)

    def rep(a):  # replicated full-block param (resident across the grid)
        return pl.BlockSpec(a.shape, lambda i: (0, 0))

    out_t = pl.pallas_call(
        superhealth_kernel,
        out_shape=jax.ShapeDtypeStruct((4, Bp), jnp.float32),
        grid_spec=pltpu.PrefetchScalarGridSpec(
            num_scalar_prefetch=0,
            grid=grid,
            in_specs=[
                pl.BlockSpec((4, bt), lambda i: (0, i)),   # x tile (lane-dense)
                rep(w1), rep(b1),
                rep(w2), rep(b2),
                rep(w3), rep(b3),
                rep(w4), rep(b4),
            ],
            out_specs=pl.BlockSpec((4, bt), lambda i: (0, i)),
        ),
        compiler_params=pltpu.CompilerParams(
            dimension_semantics=("parallel",)),
    )(x_t, w1, b1, w2, b2, w3, b3, w4, b4)

    return out_t[:, :B] if Bp != B else out_t


def superhealth_forward(x, kernel_params, *, batch_tile=4096):
    """(B, 4) convenience wrapper matching the PyTorch module's layout.
    NOTE: the transposes here are extra HBM round trips; prefer superhealth_forward_t
    and keep activations in (features, batch) layout across the model boundary."""
    out_t = superhealth_forward_t(x.T.astype(jnp.bfloat16), kernel_params,
                                  batch_tile=batch_tile)
    return out_t.T


def init_raw_params(key):
    """PyTorch-style Linear init + non-trivial BatchNorm1d eval-mode stats."""
    dims = [(4, 128), (128, 64), (64, 32), (32, 4)]
    keys = jax.random.split(key, 6 * len(dims))
    raw = []
    for li, (din, dout) in enumerate(dims):
        kw, kb, kg, kbe, km, kv = keys[6 * li:6 * (li + 1)]
        bound = 1.0 / jnp.sqrt(jnp.float32(din))
        layer = {
            "w": jax.random.uniform(kw, (din, dout), jnp.float32, -bound, bound),
            "b": jax.random.uniform(kb, (dout,), jnp.float32, -bound, bound),
        }
        if li < 3:  # fc1/fc2/fc3 are followed by BatchNorm1d
            layer.update(
                gamma=jax.random.uniform(kg, (dout,), jnp.float32, 0.8, 1.2),
                beta=jax.random.uniform(kbe, (dout,), jnp.float32, -0.1, 0.1),
                mean=0.1 * jax.random.normal(km, (dout,), jnp.float32),
                var=jax.random.uniform(kv, (dout,), jnp.float32, 0.5, 1.5),
            )
        raw.append(layer)
    return raw


def prepare_kernel_params(raw, *, matmul_dtype=jnp.bfloat16):
    """Fold eval-mode BN into W/b, transpose to (out, in) for the (features, batch)
    layout.  Layer-1 weights stay f32 (VPU path); layers 2-4 use matmul_dtype
    (bf16 by default; pass jnp.float32 on v5e to skip the inter-layer casts)."""
    ks = []
    for li, layer in enumerate(raw):
        w, b = layer["w"], layer["b"]          # (din, dout), (dout,)
        if li < 3:  # fold eval-mode BatchNorm1d into the linear layer
            scale = layer["gamma"] / jnp.sqrt(layer["var"] + EPS)
            w = w * scale[None, :]
            b = b * scale + (layer["beta"] - layer["mean"] * scale)
        wt = w.T                                # (out, in)
        ks.append(wt.astype(jnp.float32 if li == 0 else matmul_dtype))
        ks.append(b[:, None].astype(jnp.float32))   # (out, 1) bias for f32 epilogue
    return tuple(ks)


def reference_forward(x, raw):
    """Pure-JAX f32 reference, un-fused (Linear -> BN(running stats) -> ReLU)."""
    h = x
    for li, layer in enumerate(raw):
        h = h @ layer["w"] + layer["b"]
        if li < 3:
            h = (h - layer["mean"]) / jnp.sqrt(layer["var"] + EPS)
            h = h * layer["gamma"] + layer["beta"]
            h = jnp.maximum(h, 0.0)
            # dropout: identity in eval mode
    return h


if __name__ == "__main__":
    key = jax.random.PRNGKey(0)
    k_param, k_x = jax.random.split(key)

    raw_params = init_raw_params(k_param)
    kernel_params = prepare_kernel_params(raw_params)

    B = 256  # small multiple of 128 (lane-dense batch tiles)
    # Canonical (features, batch) layout input, bf16 for half the activation DMA bytes.
    x_t = jax.random.normal(k_x, (4, B), jnp.float32).astype(jnp.bfloat16)

    out_t = superhealth_forward_t(x_t, kernel_params)
    out_t = jax.block_until_ready(out_t)
    assert out_t.shape == (4, B) and out_t.dtype == jnp.float32

    ref = reference_forward(x_t.astype(jnp.float32).T, raw_params)   # (B, 4)
    max_err = float(jnp.max(jnp.abs(out_t.T - ref)))
    assert jnp.allclose(out_t.T, ref, atol=3e-2, rtol=3e-2), (
        f"mismatch vs JAX reference (max |err| = {max_err})")

    # Also exercise the (B, 4) compatibility wrapper once.
    out = jax.block_until_ready(
        superhealth_forward(x_t.astype(jnp.float32).T, kernel_params))
    assert out.shape == (B, 4)
    assert jnp.allclose(out, ref, atol=3e-2, rtol=3e-2)

    print("KERNEL_OK")
</pallas_src>

<mosaic_0001>
module attributes {stable_mosaic.version = 11 : i64} {
  func.func @superhealth_kernel(%arg0: i32, %arg1: memref<4x256xbf16, #tpu.memory_space<vmem>>, %arg2: memref<128x4xf32, #tpu.memory_space<vmem>>, %arg3: memref<128x1xf32, #tpu.memory_space<vmem>>, %arg4: memref<64x128xbf16, #tpu.memory_space<vmem>>, %arg5: memref<64x1xf32, #tpu.memory_space<vmem>>, %arg6: memref<32x64xbf16, #tpu.memory_space<vmem>>, %arg7: memref<32x1xf32, #tpu.memory_space<vmem>>, %arg8: memref<4x32xbf16, #tpu.memory_space<vmem>>, %arg9: memref<4x1xf32, #tpu.memory_space<vmem>>, %arg10: memref<4x256xf32, #tpu.memory_space<vmem>>) attributes {dimension_semantics = [#tpu.dimension_semantics<parallel>], iteration_bounds = array<i64: 1>, scalar_prefetch = 0 : i64, scratch_operands = 0 : i64, tpu.core_type = #tpu.core_type<tc>, window_params = [{transform_indices = @transform_0, window_bounds = array<i64: 4, 256>}, {pipeline_mode = #tpu.pipeline_mode<synchronous>, transform_indices = @transform_1, window_bounds = array<i64: 128, 4>}, {pipeline_mode = #tpu.pipeline_mode<synchronous>, transform_indices = @transform_2, window_bounds = array<i64: 128, 1>}, {pipeline_mode = #tpu.pipeline_mode<synchronous>, transform_indices = @transform_3, window_bounds = array<i64: 64, 128>}, {pipeline_mode = #tpu.pipeline_mode<synchronous>, transform_indices = @transform_4, window_bounds = array<i64: 64, 1>}, {pipeline_mode = #tpu.pipeline_mode<synchronous>, transform_indices = @transform_5, window_bounds = array<i64: 32, 64>}, {pipeline_mode = #tpu.pipeline_mode<synchronous>, transform_indices = @transform_6, window_bounds = array<i64: 32, 1>}, {pipeline_mode = #tpu.pipeline_mode<synchronous>, transform_indices = @transform_7, window_bounds = array<i64: 4, 32>}, {pipeline_mode = #tpu.pipeline_mode<synchronous>, transform_indices = @transform_8, window_bounds = array<i64: 4, 1>}, {transform_indices = @transform_9, window_bounds = array<i64: 4, 256>}]} {
    %c0 = arith.constant 0 : index
    %c0_0 = arith.constant 0 : index
    %0 = vector.load %arg1[%c0, %c0_0] : memref<4x256xbf16, #tpu.memory_space<vmem>>, vector<4x256xbf16>
    %1 = arith.extf %0 : vector<4x256xbf16> to vector<4x256xf32>
    %c0_1 = arith.constant 0 : index
    %c0_2 = arith.constant 0 : index
    %2 = vector.load %arg2[%c0_1, %c0_2] : memref<128x4xf32, #tpu.memory_space<vmem>>, vector<128x4xf32>
    %c0_3 = arith.constant 0 : index
    %c0_4 = arith.constant 0 : index
    %3 = vector.load %arg3[%c0_3, %c0_4] : memref<128x1xf32, #tpu.memory_space<vmem>>, vector<128x1xf32>
    %4 = vector.extract_strided_slice %2 {offsets = [0, 0], sizes = [128, 1], strides = [1, 1]} : vector<128x4xf32> to vector<128x1xf32>
    %5 = vector.extract_strided_slice %1 {offsets = [0, 0], sizes = [1, 256], strides = [1, 1]} : vector<4x256xf32> to vector<1x256xf32>
    %6 = vector.broadcast %4 : vector<128x1xf32> to vector<128x256xf32>
    %7 = vector.broadcast %5 : vector<1x256xf32> to vector<128x256xf32>
    %8 = arith.mulf %6, %7 : vector<128x256xf32>
    %9 = vector.broadcast %3 : vector<128x1xf32> to vector<128x256xf32>
    %10 = arith.addf %9, %8 : vector<128x256xf32>
    %11 = vector.extract_strided_slice %2 {offsets = [0, 1], sizes = [128, 1], strides = [1, 1]} : vector<128x4xf32> to vector<128x1xf32>
    %12 = vector.extract_strided_slice %1 {offsets = [1, 0], sizes = [1, 256], strides = [1, 1]} : vector<4x256xf32> to vector<1x256xf32>
    %13 = vector.broadcast %11 : vector<128x1xf32> to vector<128x256xf32>
    %14 = vector.broadcast %12 : vector<1x256xf32> to vector<128x256xf32>
    %15 = arith.mulf %13, %14 : vector<128x256xf32>
    %16 = arith.addf %10, %15 : vector<128x256xf32>
    %17 = vector.extract_strided_slice %2 {offsets = [0, 2], sizes = [128, 1], strides = [1, 1]} : vector<128x4xf32> to vector<128x1xf32>
    %18 = vector.extract_strided_slice %1 {offsets = [2, 0], sizes = [1, 256], strides = [1, 1]} : vector<4x256xf32> to vector<1x256xf32>
    %19 = vector.broadcast %17 : vector<128x1xf32> to vector<128x256xf32>
    %20 = vector.broadcast %18 : vector<1x256xf32> to vector<128x256xf32>
    %21 = arith.mulf %19, %20 : vector<128x256xf32>
    %22 = arith.addf %16, %21 : vector<128x256xf32>
    %23 = vector.extract_strided_slice %2 {offsets = [0, 3], sizes = [128, 1], strides = [1, 1]} : vector<128x4xf32> to vector<128x1xf32>
    %24 = vector.extract_strided_slice %1 {offsets = [3, 0], sizes = [1, 256], strides = [1, 1]} : vector<4x256xf32> to vector<1x256xf32>
    %25 = vector.broadcast %23 : vector<128x1xf32> to vector<128x256xf32>
    %26 = vector.broadcast %24 : vector<1x256xf32> to vector<128x256xf32>
    %27 = arith.mulf %25, %26 : vector<128x256xf32>
    %28 = arith.addf %22, %27 : vector<128x256xf32>
    %cst = arith.constant 0.000000e+00 : f32
    %29 = vector.broadcast %cst : f32 to vector<128x256xf32>
    %30 = arith.maximumf %28, %29 : vector<128x256xf32>
    %31 = arith.truncf %30 : vector<128x256xf32> to vector<128x256xbf16>
    %c0_5 = arith.constant 0 : index
    %c0_6 = arith.constant 0 : index
    %32 = vector.load %arg4[%c0_5, %c0_6] : memref<64x128xbf16, #tpu.memory_space<vmem>>, vector<64x128xbf16>
    %cst_7 = arith.constant dense<0.000000e+00> : vector<64x256xf32>
    %33 = tpu.matmul %32, %31, %cst_7 {dimension_numbers = #tpu.dot_dimension_numbers<[1], [0], [0], [1], [0, 0, 1, 1], [], []>} : vector<64x128xbf16>, vector<128x256xbf16>, vector<64x256xf32> -> vector<64x256xf32>
    %c0_8 = arith.constant 0 : index
    %c0_9 = arith.constant 0 : index
    %34 = vector.load %arg5[%c0_8, %c0_9] : memref<64x1xf32, #tpu.memory_space<vmem>>, vector<64x1xf32>
    %35 = vector.broadcast %34 : vector<64x1xf32> to vector<64x256xf32>
    %36 = arith.addf %33, %35 : vector<64x256xf32>
    %cst_10 = arith.constant 0.000000e+00 : f32
    %37 = vector.broadcast %cst_10 : f32 to vector<64x256xf32>
    %38 = arith.maximumf %36, %37 : vector<64x256xf32>
    %39 = arith.truncf %38 : vector<64x256xf32> to vector<64x256xbf16>
    %c0_11 = arith.constant 0 : index
    %c0_12 = arith.constant 0 : index
    %40 = vector.load %arg6[%c0_11, %c0_12] : memref<32x64xbf16, #tpu.memory_space<vmem>>, vector<32x64xbf16>
    %cst_13 = arith.constant dense<0.000000e+00> : vector<32x256xf32>
    %41 = tpu.matmul %40, %39, %cst_13 {dimension_numbers = #tpu.dot_dimension_numbers<[1], [0], [0], [1], [0, 0, 1, 1], [], []>} : vector<32x64xbf16>, vector<64x256xbf16>, vector<32x256xf32> -> vector<32x256xf32>
    %c0_14 = arith.constant 0 : index
    %c0_15 = arith.constant 0 : index
    %42 = vector.load %arg7[%c0_14, %c0_15] : memref<32x1xf32, #tpu.memory_space<vmem>>, vector<32x1xf32>
    %43 = vector.broadcast %42 : vector<32x1xf32> to vector<32x256xf32>
    %44 = arith.addf %41, %43 : vector<32x256xf32>
    %cst_16 = arith.constant 0.000000e+00 : f32
    %45 = vector.broadcast %cst_16 : f32 to vector<32x256xf32>
    %46 = arith.maximumf %44, %45 : vector<32x256xf32>
    %47 = arith.truncf %46 : vector<32x256xf32> to vector<32x256xbf16>
    %c0_17 = arith.constant 0 : index
    %c0_18 = arith.constant 0 : index
    %48 = vector.load %arg8[%c0_17, %c0_18] : memref<4x32xbf16, #tpu.memory_space<vmem>>, vector<4x32xbf16>
    %cst_19 = arith.constant dense<0.000000e+00> : vector<4x256xf32>
    %49 = tpu.matmul %48, %47, %cst_19 {dimension_numbers = #tpu.dot_dimension_numbers<[1], [0], [0], [1], [0, 0, 1, 1], [], []>} : vector<4x32xbf16>, vector<32x256xbf16>, vector<4x256xf32> -> vector<4x256xf32>
    %c0_20 = arith.constant 0 : index
    %c0_21 = arith.constant 0 : index
    %50 = vector.load %arg9[%c0_20, %c0_21] : memref<4x1xf32, #tpu.memory_space<vmem>>, vector<4x1xf32>
    %51 = vector.broadcast %50 : vector<4x1xf32> to vector<4x256xf32>
    %52 = arith.addf %49, %51 : vector<4x256xf32>
    %c0_22 = arith.constant 0 : index
    %c0_23 = arith.constant 0 : index
    %53 = vector.load %arg10[%c0_22, %c0_23] : memref<4x256xf32, #tpu.memory_space<vmem>>, vector<4x256xf32>
    tpu.vector_store %arg10[%c0_22, %c0_23], %52 {strides = array<i32>} : memref<4x256xf32, #tpu.memory_space<vmem>>, vector<4x256xf32>,
    return
  }
  func.func @transform_0(%arg0: i32) -> (i32, i32) {
    %c0_i32 = arith.constant 0 : i32
    %c0_i32_0 = arith.constant 0 : i32
    return %c0_i32, %arg0 : i32, i32
  }
  func.func @transform_1(%arg0: i32) -> (i32, i32) {
    %c0_i32 = arith.constant 0 : i32
    %c0_i32_0 = arith.constant 0 : i32
    %c0_i32_1 = arith.constant 0 : i32
    return %c0_i32, %c0_i32_0 : i32, i32
  }
  func.func @transform_2(%arg0: i32) -> (i32, i32) {
    %c0_i32 = arith.constant 0 : i32
    %c0_i32_0 = arith.constant 0 : i32
    %c0_i32_1 = arith.constant 0 : i32
    return %c0_i32, %c0_i32_0 : i32, i32
  }
  func.func @transform_3(%arg0: i32) -> (i32, i32) {
    %c0_i32 = arith.constant 0 : i32
    %c0_i32_0 = arith.constant 0 : i32
    %c0_i32_1 = arith.constant 0 : i32
    return %c0_i32, %c0_i32_0 : i32, i32
  }
  func.func @transform_4(%arg0: i32) -> (i32, i32) {
    %c0_i32 = arith.constant 0 : i32
    %c0_i32_0 = arith.constant 0 : i32
    %c0_i32_1 = arith.constant 0 : i32
    return %c0_i32, %c0_i32_0 : i32, i32
  }
  func.func @transform_5(%arg0: i32) -> (i32, i32) {
    %c0_i32 = arith.constant 0 : i32
    %c0_i32_0 = arith.constant 0 : i32
    %c0_i32_1 = arith.constant 0 : i32
    return %c0_i32, %c0_i32_0 : i32, i32
  }
  func.func @transform_6(%arg0: i32) -> (i32, i32) {
    %c0_i32 = arith.constant 0 : i32
    %c0_i32_0 = arith.constant 0 : i32
    %c0_i32_1 = arith.constant 0 : i32
    return %c0_i32, %c0_i32_0 : i32, i32
  }
  func.func @transform_7(%arg0: i32) -> (i32, i32) {
    %c0_i32 = arith.constant 0 : i32
    %c0_i32_0 = arith.constant 0 : i32
    %c0_i32_1 = arith.constant 0 : i32
    return %c0_i32, %c0_i32_0 : i32, i32
  }
  func.func @transform_8(%arg0: i32) -> (i32, i32) {
    %c0_i32 = arith.constant 0 : i32
    %c0_i32_0 = arith.constant 0 : i32
    %c0_i32_1 = arith.constant 0 : i32
    return %c0_i32, %c0_i32_0 : i32, i32
  }
  func.func @transform_9(%arg0: i32) -> (i32, i32) {
    %c0_i32 = arith.constant 0 : i32
    %c0_i32_0 = arith.constant 0 : i32
    return %c0_i32, %arg0 : i32, i32
  }
}

</mosaic_0001>

<llo_original>
// kernel: tpu_custom_call.1
$region0: #{tpu_custom_call.1}
  #allocation0 [shape = 'u32[]', space=smem, size = 0x4, offset = 0x4, fixed_abs, tag = 'smem constant byte address 0x4 - core index']
  #allocation1 [shape = 'u32[72,128]{1,0:T(1,128)}', space=vmem, size = 0x9000, scoped, tag = 'internal scratch']
  %s0 = inlined_call_operand.vmem [shape: bf16[4,256], index: 0, kind: input, shape index: {}]
  %s1 = inlined_call_operand.vmem [shape: f32[128,4], index: 1, kind: input, shape index: {}]
  %s2 = inlined_call_operand.vmem [shape: f32[128,1], index: 2, kind: input, shape index: {}]
  %s3 = inlined_call_operand.vmem [shape: bf16[64,128], index: 3, kind: input, shape index: {}]
  %s4 = inlined_call_operand.vmem [shape: f32[64,1], index: 4, kind: input, shape index: {}]
  %s5 = inlined_call_operand.vmem [shape: bf16[32,64], index: 5, kind: input, shape index: {}]
  %s6 = inlined_call_operand.vmem [shape: f32[32,1], index: 6, kind: input, shape index: {}]
  %s7 = inlined_call_operand.vmem [shape: bf16[4,32], index: 7, kind: input, shape index: {}]
  %s8 = inlined_call_operand.vmem [shape: f32[4,1], index: 8, kind: input, shape index: {}]
  %s9 = inlined_call_operand.hbm [shape: f32[4,256], index: 9, kind: output, shape index: {}]
  %s10 = sld [smem:[#allocation0]]
  $region46: #{tpu_custom_call.1} parent=0
    _
  %s12 = ssub.s32 1, %s10
  %s13 = scalar_select 0, %s12, %s10
  $region1: #{tpu_custom_call.1} parent=0
    #allocation2 [shape = 'u8[4096]{0}', space=vmem, size = 0x1000, scoped, tag = 'output window, operand 0, single buffered']
    #allocation3 [shape = 's32[1]{0}', space=sflag, size = 0x4, scoped, tag = 'scoped memory for tpu_custom_call.1']
    %14 = vsyncpa [#allocation3], 0
    // Predicated region
    $region2: #{tpu_custom_call.1} parent=1 // pred_check
      _
    $region3: #{tpu_custom_call.1} parent=1 // pred_check_branch
      %16 = sbr.rel (0) target = $region5
    $region4: #{tpu_custom_call.1} parent=1 // pred_region
      _
    $region5: #{tpu_custom_call.1} parent=1 // pred_fallthru
      _
    // Predicated region
    $region6: #{tpu_custom_call.1} parent=1 // pred_check
      _
    $region7: #{tpu_custom_call.1} parent=1 // pred_check_branch
      %18 = sbr.rel (0) target = $region9
    $region8: #{tpu_custom_call.1} parent=1 // pred_region
      _
    $region9: #{tpu_custom_call.1} parent=1 // pred_fallthru
      _
    // Predicated region
    $region10: #{tpu_custom_call.1} parent=1 // pred_check
      _
    $region11: #{tpu_custom_call.1} parent=1 // pred_check_branch
      %20 = sbr.rel (0) target = $region13
    $region12: #{tpu_custom_call.1} parent=1 // pred_region
      _
    $region13: #{tpu_custom_call.1} parent=1 // pred_fallthru
      _
    // Predicated region
    $region14: #{tpu_custom_call.1} parent=1 // pred_check
      _
    $region15: #{tpu_custom_call.1} parent=1 // pred_check_branch
      %22 = sbr.rel (0) target = $region17
    $region16: #{tpu_custom_call.1} parent=1 // pred_region
      _
    $region17: #{tpu_custom_call.1} parent=1 // pred_fallthru
      _
    // Predicated region
    $region18: #{tpu_custom_call.1} parent=1 // pred_check
      _
    $region19: #{tpu_custom_call.1} parent=1 // pred_check_branch
      %24 = sbr.rel (0) target = $region21
    $region20: #{tpu_custom_call.1} parent=1 // pred_region
      _
    $region21: #{tpu_custom_call.1} parent=1 // pred_fallthru
      _
    // Predicated region
    $region22: #{tpu_custom_call.1} parent=1 // pred_check
      _
    $region23: #{tpu_custom_call.1} parent=1 // pred_check_branch
      %26 = sbr.rel (0) target = $region25
    $region24: #{tpu_custom_call.1} parent=1 // pred_region
      _
    $region25: #{tpu_custom_call.1} parent=1 // pred_fallthru
      _
    // Predicated region
    $region26: #{tpu_custom_call.1} parent=1 // pred_check
      _
    $region27: #{tpu_custom_call.1} parent=1 // pred_check_branch
      %28 = sbr.rel (0) target = $region29
    $region28: #{tpu_custom_call.1} parent=1 // pred_region
      _
    $region29: #{tpu_custom_call.1} parent=1 // pred_fallthru
      _
    // Predicated region
    $region30: #{tpu_custom_call.1} parent=1 // pred_check
      _
    $region31: #{tpu_custom_call.1} parent=1 // pred_check_branch
      %30 = sbr.rel (0) target = $region33
    $region32: #{tpu_custom_call.1} parent=1 // pred_region
      _
    $region33: #{tpu_custom_call.1} parent=1 // pred_fallthru
      _
    // Predicated region
    $region34: #{tpu_custom_call.1} parent=1 // pred_check
      _
    $region35: #{tpu_custom_call.1} parent=1 // pred_check_branch
      %32 = sbr.rel (0) target = $region37
    $region36: #{tpu_custom_call.1} parent=1 // pred_region
      _
    $region37: #{tpu_custom_call.1} parent=1 // pred_fallthru
      _
    %v34 = vld [vmem:[%s0] sm:$0xf]
    %v35 = vunpack.c.l.bf16 %v34
    %v36 = vld [vmem:[%s1] sm:$0xff]
    %v37 = vld [vmem:[%s1 + $0x8] sm:$0xff]
    %v38 = vld [vmem:[%s1 + $0x10] sm:$0xff]
    %v39 = vld [vmem:[%s1 + $0x18] sm:$0xff]
    %v40 = vld [vmem:[%s1 + $0x20] sm:$0xff]
    %v41 = vld [vmem:[%s1 + $0x28] sm:$0xff]
    %v42 = vld [vmem:[%s1 + $0x30] sm:$0xff]
    %v43 = vld [vmem:[%s1 + $0x38] sm:$0xff]
    %v44 = vld [vmem:[%s1 + $0x40] sm:$0xff]
    %v45 = vld [vmem:[%s1 + $0x48] sm:$0xff]
    %v46 = vld [vmem:[%s1 + $0x50] sm:$0xff]
    %v47 = vld [vmem:[%s1 + $0x58] sm:$0xff]
    %v48 = vld [vmem:[%s1 + $0x60] sm:$0xff]
    %v49 = vld [vmem:[%s1 + $0x68] sm:$0xff]
    %v50 = vld [vmem:[%s1 + $0x70] sm:$0xff]
    %v51 = vld [vmem:[%s1 + $0x78] sm:$0xff]
    %v52 = vld [vmem:[%s2] sm:$0xff]
    %v53 = vld [vmem:[%s2 + $0x8] sm:$0xff]
    %v54 = vld [vmem:[%s2 + $0x10] sm:$0xff]
    %v55 = vld [vmem:[%s2 + $0x18] sm:$0xff]
    %v56 = vld [vmem:[%s2 + $0x20] sm:$0xff]
    %v57 = vld [vmem:[%s2 + $0x28] sm:$0xff]
    %v58 = vld [vmem:[%s2 + $0x30] sm:$0xff]
    %v59 = vld [vmem:[%s2 + $0x38] sm:$0xff]
    %v60 = vld [vmem:[%s2 + $0x40] sm:$0xff]
    %v61 = vld [vmem:[%s2 + $0x48] sm:$0xff]
    %v62 = vld [vmem:[%s2 + $0x50] sm:$0xff]
    %v63 = vld [vmem:[%s2 + $0x58] sm:$0xff]
    %v64 = vld [vmem:[%s2 + $0x60] sm:$0xff]
    %v65 = vld [vmem:[%s2 + $0x68] sm:$0xff]
    %v66 = vld [vmem:[%s2 + $0x70] sm:$0xff]
    %v67 = vld [vmem:[%s2 + $0x78] sm:$0xff]
    %69 = vset.pattern.permute.xlu0 0
    %70 = vperm.xlu0 %69, %v36
    %v71 = vpop.permute.xlu0 %70
    %74 = vset.pattern.permute.xlu0 0
    %75 = vperm.xlu0 %74, %v37
    %v76 = vpop.permute.xlu0 %75
    %79 = vset.pattern.permute.xlu0 0
    %80 = vperm.xlu0 %79, %v38
    %v81 = vpop.permute.xlu0 %80
    %84 = vset.pattern.permute.xlu0 0
    %85 = vperm.xlu0 %84, %v39
    %v86 = vpop.permute.xlu0 %85
    %89 = vset.pattern.permute.xlu0 0
    %90 = vperm.xlu0 %89, %v40
    %v91 = vpop.permute.xlu0 %90
    %94 = vset.pattern.permute.xlu0 0
    %95 = vperm.xlu0 %94, %v41
    %v96 = vpop.permute.xlu0 %95
    %99 = vset.pattern.permute.xlu0 0
    %100 = vperm.xlu0 %99, %v42
    %v101 = vpop.permute.xlu0 %100
    %104 = vset.pattern.permute.xlu0 0
    %105 = vperm.xlu0 %104, %v43
    %v106 = vpop.permute.xlu0 %105
    %109 = vset.pattern.permute.xlu0 0
    %110 = vperm.xlu0 %109, %v44
    %v111 = vpop.permute.xlu0 %110
    %114 = vset.pattern.permute.xlu0 0
    %115 = vperm.xlu0 %114, %v45
    %v116 = vpop.permute.xlu0 %115
    %119 = vset.pattern.permute.xlu0 0
    %120 = vperm.xlu0 %119, %v46
    %v121 = vpop.permute.xlu0 %120
    %124 = vset.pattern.permute.xlu0 0
    %125 = vperm.xlu0 %124, %v47
    %v126 = vpop.permute.xlu0 %125
    %129 = vset.pattern.permute.xlu0 0
    %130 = vperm.xlu0 %129, %v48
    %v131 = vpop.permute.xlu0 %130
    %134 = vset.pattern.permute.xlu0 0
    %135 = vperm.xlu0 %134, %v49
    %v136 = vpop.permute.xlu0 %135
    %139 = vset.pattern.permute.xlu0 0
    %140 = vperm.xlu0 %139, %v50
    %v141 = vpop.permute.xlu0 %140
    %144 = vset.pattern.permute.xlu0 0
    %145 = vperm.xlu0 %144, %v51
    %v146 = vpop.permute.xlu0 %145
    %v149 = vperm.slane %v35, 0
    %v150 = vperm.slane %v35, 4
    %v153 = vperm.slane %v149, 0
    %v154 = vperm.slane %v150, 0
    %v155 = vmul.f32 %v71, %v153
    %v156 = vmul.f32 %v71, %v154
    %v157 = vmul.f32 %v76, %v153
    %v158 = vmul.f32 %v76, %v154
    %v159 = vmul.f32 %v81, %v153
    %v160 = vmul.f32 %v81, %v154
    %v161 = vmul.f32 %v86, %v153
    %v162 = vmul.f32 %v86, %v154
    %v163 = vmul.f32 %v91, %v153
    %v164 = vmul.f32 %v91, %v154
    %v165 = vmul.f32 %v96, %v153
    %v166 = vmul.f32 %v96, %v154
    %v167 = vmul.f32 %v101, %v153
    %v168 = vmul.f32 %v101, %v154
    %v169 = vmul.f32 %v106, %v153
    %v170 = vmul.f32 %v106, %v154
    %v171 = vmul.f32 %v111, %v153
    %v172 = vmul.f32 %v111, %v154
    %v173 = vmul.f32 %v116, %v153
    %v174 = vmul.f32 %v116, %v154
    %v175 = vmul.f32 %v121, %v153
    %v176 = vmul.f32 %v121, %v154
    %v177 = vmul.f32 %v126, %v153
    %v178 = vmul.f32 %v126, %v154
    %v179 = vmul.f32 %v131, %v153
    %v180 = vmul.f32 %v131, %v154
    %v181 = vmul.f32 %v136, %v153
    %v182 = vmul.f32 %v136, %v154
    %v183 = vmul.f32 %v141, %v153
    %v184 = vmul.f32 %v141, %v154
    %v185 = vmul.f32 %v146, %v153
    %v186 = vmul.f32 %v146, %v154
    %188 = vset.pattern.permute.xlu0 0
    %189 = vperm.xlu0 %188, %v52
    %v190 = vpop.permute.xlu0 %189
    %193 = vset.pattern.permute.xlu0 0
    %194 = vperm.xlu0 %193, %v53
    %v195 = vpop.permute.xlu0 %194
    %198 = vset.pattern.permute.xlu0 0
    %199 = vperm.xlu0 %198, %v54
    %v200 = vpop.permute.xlu0 %199
    %203 = vset.pattern.permute.xlu0 0
    %204 = vperm.xlu0 %203, %v55
    %v205 = vpop.permute.xlu0 %204
    %208 = vset.pattern.permute.xlu0 0
    %209 = vperm.xlu0 %208, %v56
    %v210 = vpop.permute.xlu0 %209
    %213 = vset.pattern.permute.xlu0 0
    %214 = vperm.xlu0 %213, %v57
    %v215 = vpop.permute.xlu0 %214
    %218 = vset.pattern.permute.xlu0 0
    %219 = vperm.xlu0 %218, %v58
    %v220 = vpop.permute.xlu0 %219
    %223 = vset.pattern.permute.xlu0 0
    %224 = vperm.xlu0 %223, %v59
    %v225 = vpop.permute.xlu0 %224
    %228 = vset.pattern.permute.xlu0 0
    %229 = vperm.xlu0 %228, %v60
    %v230 = vpop.permute.xlu0 %229
    %233 = vset.pattern.permute.xlu0 0
    %234 = vperm.xlu0 %233, %v61
    %v235 = vpop.permute.xlu0 %234
    %238 = vset.pattern.permute.xlu0 0
    %239 = vperm.xlu0 %238, %v62
    %v240 = vpop.permute.xlu0 %239
    %243 = vset.pattern.permute.xlu0 0
    %244 = vperm.xlu0 %243, %v63
    %v245 = vpop.permute.xlu0 %244
    %248 = vset.pattern.permute.xlu0 0
    %249 = vperm.xlu0 %248, %v64
    %v250 = vpop.permute.xlu0 %249
    %253 = vset.pattern.permute.xlu0 0
    %254 = vperm.xlu0 %253, %v65
    %v255 = vpop.permute.xlu0 %254
    %258 = vset.pattern.permute.xlu0 0
    %259 = vperm.xlu0 %258, %v66
    %v260 = vpop.permute.xlu0 %259
    %263 = vset.pattern.permute.xlu0 0
    %264 = vperm.xlu0 %263, %v67
    %v265 = vpop.permute.xlu0 %264
    %v267 = vadd.f32 %v190, %v155
    %v268 = vadd.f32 %v190, %v156
    %v269 = vadd.f32 %v195, %v157
    %v270 = vadd.f32 %v195, %v158
    %v271 = vadd.f32 %v200, %v159
    %v272 = vadd.f32 %v200, %v160
    %v273 = vadd.f32 %v205, %v161
    %v274 = vadd.f32 %v205, %v162
    %v275 = vadd.f32 %v210, %v163
    %v276 = vadd.f32 %v210, %v164
    %v277 = vadd.f32 %v215, %v165
    %v278 = vadd.f32 %v215, %v166
    %v279 = vadd.f32 %v220, %v167
    %v280 = vadd.f32 %v220, %v168
    %v281 = vadd.f32 %v225, %v169
    %v282 = vadd.f32 %v225, %v170
    %v283 = vadd.f32 %v230, %v171
    %v284 = vadd.f32 %v230, %v172
    %v285 = vadd.f32 %v235, %v173
    %v286 = vadd.f32 %v235, %v174
    %v287 = vadd.f32 %v240, %v175
    %v288 = vadd.f32 %v240, %v176
    %v289 = vadd.f32 %v245, %v177
    %v290 = vadd.f32 %v245, %v178
    %v291 = vadd.f32 %v250, %v179
    %v292 = vadd.f32 %v250, %v180
    %v293 = vadd.f32 %v255, %v181
    %v294 = vadd.f32 %v255, %v182
    %v295 = vadd.f32 %v260, %v183
    %v296 = vadd.f32 %v260, %v184
    %v297 = vadd.f32 %v265, %v185
    %v298 = vadd.f32 %v265, %v186
    %299 = vset.pattern.permute.xlu0 1
    %300 = vperm.xlu0 %299, %v36
    %v301 = vpop.permute.xlu0 %300
    %303 = vset.pattern.permute.xlu0 1
    %304 = vperm.xlu0 %303, %v37
    %v305 = vpop.permute.xlu0 %304
    %307 = vset.pattern.permute.xlu0 1
    %308 = vperm.xlu0 %307, %v38
    %v309 = vpop.permute.xlu0 %308
    %311 = vset.pattern.permute.xlu0 1
    %312 = vperm.xlu0 %311, %v39
    %v313 = vpop.permute.xlu0 %312
    %315 = vset.pattern.permute.xlu0 1
    %316 = vperm.xlu0 %315, %v40
    %v317 = vpop.permute.xlu0 %316
    %319 = vset.pattern.permute.xlu0 1
    %320 = vperm.xlu0 %319, %v41
    %v321 = vpop.permute.xlu0 %320
    %323 = vset.pattern.permute.xlu0 1
    %324 = vperm.xlu0 %323, %v42
    %v325 = vpop.permute.xlu0 %324
    %327 = vset.pattern.permute.xlu0 1
    %328 = vperm.xlu0 %327, %v43
    %v329 = vpop.permute.xlu0 %328
    %331 = vset.pattern.permute.xlu0 1
    %332 = vperm.xlu0 %331, %v44
    %v333 = vpop.permute.xlu0 %332
    %335 = vset.pattern.permute.xlu0 1
    %336 = vperm.xlu0 %335, %v45
    %v337 = vpop.permute.xlu0 %336
    %339 = vset.pattern.permute.xlu0 1
    %340 = vperm.xlu0 %339, %v46
    %v341 = vpop.permute.xlu0 %340
    %343 = vset.pattern.permute.xlu0 1
    %344 = vperm.xlu0 %343, %v47
    %v345 = vpop.permute.xlu0 %344
    %347 = vset.pattern.permute.xlu0 1
    %348 = vperm.xlu0 %347, %v48
    %v349 = vpop.permute.xlu0 %348
    %351 = vset.pattern.permute.xlu0 1
    %352 = vperm.xlu0 %351, %v49
    %v353 = vpop.permute.xlu0 %352
    %355 = vset.pattern.permute.xlu0 1
    %356 = vperm.xlu0 %355, %v50
    %v357 = vpop.permute.xlu0 %356
    %359 = vset.pattern.permute.xlu0 1
    %360 = vperm.xlu0 %359, %v51
    %v361 = vpop.permute.xlu0 %360
    %v363 = vperm.slane %v35, 1
    %v364 = vperm.slane %v35, 5
    %v367 = vperm.slane %v363, 1
    %v368 = vperm.slane %v364, 1
    %v369 = vmul.f32 %v301, %v367
    %v370 = vmul.f32 %v301, %v368
    %v371 = vmul.f32 %v305, %v367
    %v372 = vmul.f32 %v305, %v368
    %v373 = vmul.f32 %v309, %v367
    %v374 = vmul.f32 %v309, %v368
    %v375 = vmul.f32 %v313, %v367
    %v376 = vmul.f32 %v313, %v368
    %v377 = vmul.f32 %v317, %v367
    %v378 = vmul.f32 %v317, %v368
    %v379 = vmul.f32 %v321, %v367
    %v380 = vmul.f32 %v321, %v368
    %v381 = vmul.f32 %v325, %v367
    %v382 = vmul.f32 %v325, %v368
    %v383 = vmul.f32 %v329, %v367
    %v384 = vmul.f32 %v329, %v368
    %v385 = vmul.f32 %v333, %v367
    %v386 = vmul.f32 %v333, %v368
    %v387 = vmul.f32 %v337, %v367
    %v388 = vmul.f32 %v337, %v368
    %v389 = vmul.f32 %v341, %v367
    %v390 = vmul.f32 %v341, %v368
    %v391 = vmul.f32 %v345, %v367
    %v392 = vmul.f32 %v345, %v368
    %v393 = vmul.f32 %v349, %v367
    %v394 = vmul.f32 %v349, %v368
    %v395 = vmul.f32 %v353, %v367
    %v396 = vmul.f32 %v353, %v368
    %v397 = vmul.f32 %v357, %v367
    %v398 = vmul.f32 %v357, %v368
    %v399 = vmul.f32 %v361, %v367
    %v400 = vmul.f32 %v361, %v368
    %v401 = vadd.f32 %v267, %v369
    %v402 = vadd.f32 %v268, %v370
    %v403 = vadd.f32 %v269, %v371
    %v404 = vadd.f32 %v270, %v372
    %v405 = vadd.f32 %v271, %v373
    %v406 = vadd.f32 %v272, %v374
    %v407 = vadd.f32 %v273, %v375
    %v408 = vadd.f32 %v274, %v376
    %v409 = vadd.f32 %v275, %v377
    %v410 = vadd.f32 %v276, %v378
    %v411 = vadd.f32 %v277, %v379
    %v412 = vadd.f32 %v278, %v380
    %v413 = vadd.f32 %v279, %v381
    %v414 = vadd.f32 %v280, %v382
    %v415 = vadd.f32 %v281, %v383
    %v416 = vadd.f32 %v282, %v384
    %v417 = vadd.f32 %v283, %v385
    %v418 = vadd.f32 %v284, %v386
    %v419 = vadd.f32 %v285, %v387
    %v420 = vadd.f32 %v286, %v388
    %v421 = vadd.f32 %v287, %v389
    %v422 = vadd.f32 %v288, %v390
    %v423 = vadd.f32 %v289, %v391
    %v424 = vadd.f32 %v290, %v392
    %v425 = vadd.f32 %v291, %v393
    %v426 = vadd.f32 %v292, %v394
    %v427 = vadd.f32 %v293, %v395
    %v428 = vadd.f32 %v294, %v396
    %v429 = vadd.f32 %v295, %v397
    %v430 = vadd.f32 %v296, %v398
    %v431 = vadd.f32 %v297, %v399
    %v432 = vadd.f32 %v298, %v400
    %433 = vset.pattern.permute.xlu0 2
    %434 = vperm.xlu0 %433, %v36
    %v435 = vpop.permute.xlu0 %434
    %437 = vset.pattern.permute.xlu0 2
    %438 = vperm.xlu0 %437, %v37
    %v439 = vpop.permute.xlu0 %438
    %441 = vset.pattern.permute.xlu0 2
    %442 = vperm.xlu0 %441, %v38
    %v443 = vpop.permute.xlu0 %442
    %445 = vset.pattern.permute.xlu0 2
    %446 = vperm.xlu0 %445, %v39
    %v447 = vpop.permute.xlu0 %446
    %449 = vset.pattern.permute.xlu0 2
    %450 = vperm.xlu0 %449, %v40
    %v451 = vpop.permute.xlu0 %450
    %453 = vset.pattern.permute.xlu0 2
    %454 = vperm.xlu0 %453, %v41
    %v455 = vpop.permute.xlu0 %454
    %457 = vset.pattern.permute.xlu0 2
    %458 = vperm.xlu0 %457, %v42
    %v459 = vpop.permute.xlu0 %458
    %461 = vset.pattern.permute.xlu0 2
    %462 = vperm.xlu0 %461, %v43
    %v463 = vpop.permute.xlu0 %462
    %465 = vset.pattern.permute.xlu0 2
    %466 = vperm.xlu0 %465, %v44
    %v467 = vpop.permute.xlu0 %466
    %469 = vset.pattern.permute.xlu0 2
    %470 = vperm.xlu0 %469, %v45
    %v471 = vpop.permute.xlu0 %470
    %473 = vset.pattern.permute.xlu0 2
    %474 = vperm.xlu0 %473, %v46
    %v475 = vpop.permute.xlu0 %474
    %477 = vset.pattern.permute.xlu0 2
    %478 = vperm.xlu0 %477, %v47
    %v479 = vpop.permute.xlu0 %478
    %481 = vset.pattern.permute.xlu0 2
    %482 = vperm.xlu0 %481, %v48
    %v483 = vpop.permute.xlu0 %482
    %485 = vset.pattern.permute.xlu0 2
    %486 = vperm.xlu0 %485, %v49
    %v487 = vpop.permute.xlu0 %486
    %489 = vset.pattern.permute.xlu0 2
    %490 = vperm.xlu0 %489, %v50
    %v491 = vpop.permute.xlu0 %490
    %493 = vset.pattern.permute.xlu0 2
    %494 = vperm.xlu0 %493, %v51
    %v495 = vpop.permute.xlu0 %494
    %v497 = vperm.slane %v35, 2
    %v498 = vperm.slane %v35, 6
    %v501 = vperm.slane %v497, 2
    %v502 = vperm.slane %v498, 2
    %v503 = vmul.f32 %v435, %v501
    %v504 = vmul.f32 %v435, %v502
    %v505 = vmul.f32 %v439, %v501
    %v506 = vmul.f32 %v439, %v502
    %v507 = vmul.f32 %v443, %v501
    %v508 = vmul.f32 %v443, %v502
    %v509 = vmul.f32 %v447, %v501
    %v510 = vmul.f32 %v447, %v502
    %v511 = vmul.f32 %v451, %v501
    %v512 = vmul.f32 %v451, %v502
    %v513 = vmul.f32 %v455, %v501
    %v514 = vmul.f32 %v455, %v502
    %v515 = vmul.f32 %v459, %v501
    %v516 = vmul.f32 %v459, %v502
    %v517 = vmul.f32 %v463, %v501
    %v518 = vmul.f32 %v463, %v502
    %v519 = vmul.f32 %v467, %v501
    %v520 = vmul.f32 %v467, %v502
    %v521 = vmul.f32 %v471, %v501
    %v522 = vmul.f32 %v471, %v502
    %v523 = vmul.f32 %v475, %v501
    %v524 = vmul.f32 %v475, %v502
    %v525 = vmul.f32 %v479, %v501
    %v526 = vmul.f32 %v479, %v502
    %v527 = vmul.f32 %v483, %v501
    %v528 = vmul.f32 %v483, %v502
    %v529 = vmul.f32 %v487, %v501
    %v530 = vmul.f32 %v487, %v502
    %v531 = vmul.f32 %v491, %v501
    %v532 = vmul.f32 %v491, %v502
    %v533 = vmul.f32 %v495, %v501
    %v534 = vmul.f32 %v495, %v502
    %v535 = vadd.f32 %v401, %v503
    %v536 = vadd.f32 %v402, %v504
    %v537 = vadd.f32 %v403, %v505
    %v538 = vadd.f32 %v404, %v506
    %v539 = vadd.f32 %v405, %v507
    %v540 = vadd.f32 %v406, %v508
    %v541 = vadd.f32 %v407, %v509
    %v542 = vadd.f32 %v408, %v510
    %v543 = vadd.f32 %v409, %v511
    %v544 = vadd.f32 %v410, %v512
    %v545 = vadd.f32 %v411, %v513
    %v546 = vadd.f32 %v412, %v514
    %v547 = vadd.f32 %v413, %v515
    %v548 = vadd.f32 %v414, %v516
    %v549 = vadd.f32 %v415, %v517
    %v550 = vadd.f32 %v416, %v518
    %v551 = vadd.f32 %v417, %v519
    %v552 = vadd.f32 %v418, %v520
    %v553 = vadd.f32 %v419, %v521
    %v554 = vadd.f32 %v420, %v522
    %v555 = vadd.f32 %v421, %v523
    %v556 = vadd.f32 %v422, %v524
    %v557 = vadd.f32 %v423, %v525
    %v558 = vadd.f32 %v424, %v526
    %v559 = vadd.f32 %v425, %v527
    %v560 = vadd.f32 %v426, %v528
    %v561 = vadd.f32 %v427, %v529
    %v562 = vadd.f32 %v428, %v530
    %v563 = vadd.f32 %v429, %v531
    %v564 = vadd.f32 %v430, %v532
    %v565 = vadd.f32 %v431, %v533
    %v566 = vadd.f32 %v432, %v534
    %567 = vset.pattern.permute.xlu0 3
    %568 = vperm.xlu0 %567, %v36
    %v569 = vpop.permute.xlu0 %568
    %571 = vset.pattern.permute.xlu0 3
    %572 = vperm.xlu0 %571, %v37
    %v573 = vpop.permute.xlu0 %572
    %575 = vset.pattern.permute.xlu0 3
    %576 = vperm.xlu0 %575, %v38
    %v577 = vpop.permute.xlu0 %576
    %579 = vset.pattern.permute.xlu0 3
    %580 = vperm.xlu0 %579, %v39
    %v581 = vpop.permute.xlu0 %580
    %583 = vset.pattern.permute.xlu0 3
    %584 = vperm.xlu0 %583, %v40
    %v585 = vpop.permute.xlu0 %584
    %587 = vset.pattern.permute.xlu0 3
    %588 = vperm.xlu0 %587, %v41
    %v589 = vpop.permute.xlu0 %588
    %591 = vset.pattern.permute.xlu0 3
    %592 = vperm.xlu0 %591, %v42
    %v593 = vpop.permute.xlu0 %592
    %595 = vset.pattern.permute.xlu0 3
    %596 = vperm.xlu0 %595, %v43
    %v597 = vpop.permute.xlu0 %596
    %599 = vset.pattern.permute.xlu0 3
    %600 = vperm.xlu0 %599, %v44
    %v601 = vpop.permute.xlu0 %600
    %603 = vset.pattern.permute.xlu0 3
    %604 = vperm.xlu0 %603, %v45
    %v605 = vpop.permute.xlu0 %604
    %607 = vset.pattern.permute.xlu0 3
    %608 = vperm.xlu0 %607, %v46
    %v609 = vpop.permute.xlu0 %608
    %611 = vset.pattern.permute.xlu0 3
    %612 = vperm.xlu0 %611, %v47
    %v613 = vpop.permute.xlu0 %612
    %615 = vset.pattern.permute.xlu0 3
    %616 = vperm.xlu0 %615, %v48
    %v617 = vpop.permute.xlu0 %616
    %619 = vset.pattern.permute.xlu0 3
    %620 = vperm.xlu0 %619, %v49
    %v621 = vpop.permute.xlu0 %620
    %623 = vset.pattern.permute.xlu0 3
    %624 = vperm.xlu0 %623, %v50
    %v625 = vpop.permute.xlu0 %624
    %627 = vset.pattern.permute.xlu0 3
    %628 = vperm.xlu0 %627, %v51
    %v629 = vpop.permute.xlu0 %628
    %v631 = vperm.slane %v35, 3
    %v632 = vperm.slane %v35, 7
    %v635 = vperm.slane %v631, 3
    %v636 = vperm.slane %v632, 3
    %v637 = vmul.f32 %v569, %v635
    %v638 = vmul.f32 %v569, %v636
    %v639 = vmul.f32 %v573, %v635
    %v640 = vmul.f32 %v573, %v636
    %v641 = vmul.f32 %v577, %v635
    %v642 = vmul.f32 %v577, %v636
    %v643 = vmul.f32 %v581, %v635
    %v644 = vmul.f32 %v581, %v636
    %v645 = vmul.f32 %v585, %v635
    %v646 = vmul.f32 %v585, %v636
    %v647 = vmul.f32 %v589, %v635
    %v648 = vmul.f32 %v589, %v636
    %v649 = vmul.f32 %v593, %v635
    %v650 = vmul.f32 %v593, %v636
    %v651 = vmul.f32 %v597, %v635
    %v652 = vmul.f32 %v597, %v636
    %v653 = vmul.f32 %v601, %v635
    %v654 = vmul.f32 %v601, %v636
    %v655 = vmul.f32 %v605, %v635
    %v656 = vmul.f32 %v605, %v636
    %v657 = vmul.f32 %v609, %v635
    %v658 = vmul.f32 %v609, %v636
    %v659 = vmul.f32 %v613, %v635
    %v660 = vmul.f32 %v613, %v636
    %v661 = vmul.f32 %v617, %v635
    %v662 = vmul.f32 %v617, %v636
    %v663 = vmul.f32 %v621, %v635
    %v664 = vmul.f32 %v621, %v636
    %v665 = vmul.f32 %v625, %v635
    %v666 = vmul.f32 %v625, %v636
    %v667 = vmul.f32 %v629, %v635
    %v668 = vmul.f32 %v629, %v636
    %v669 = vadd.f32 %v535, %v637
    %v670 = vadd.f32 %v536, %v638
    %v671 = vadd.f32 %v537, %v639
    %v672 = vadd.f32 %v538, %v640
    %v673 = vadd.f32 %v539, %v641
    %v674 = vadd.f32 %v540, %v642
    %v675 = vadd.f32 %v541, %v643
    %v676 = vadd.f32 %v542, %v644
    %v677 = vadd.f32 %v543, %v645
    %v678 = vadd.f32 %v544, %v646
    %v679 = vadd.f32 %v545, %v647
    %v680 = vadd.f32 %v546, %v648
    %v681 = vadd.f32 %v547, %v649
    %v682 = vadd.f32 %v548, %v650
    %v683 = vadd.f32 %v549, %v651
    %v684 = vadd.f32 %v550, %v652
    %v685 = vadd.f32 %v551, %v653
    %v686 = vadd.f32 %v552, %v654
    %v687 = vadd.f32 %v553, %v655
    %v688 = vadd.f32 %v554, %v656
    %v689 = vadd.f32 %v555, %v657
    %v690 = vadd.f32 %v556, %v658
    %v691 = vadd.f32 %v557, %v659
    %v692 = vadd.f32 %v558, %v660
    %v693 = vadd.f32 %v559, %v661
    %v694 = vadd.f32 %v560, %v662
    %v695 = vadd.f32 %v561, %v663
    %v696 = vadd.f32 %v562, %v664
    %v697 = vadd.f32 %v563, %v665
    %v698 = vadd.f32 %v564, %v666
    %v699 = vadd.f32 %v565, %v667
    %v700 = vadd.f32 %v566, %v668
    %v701 = vmax.f32 %v669, 0.0
    %v702 = vmax.f32 %v670, 0.0
    %v703 = vmax.f32 %v671, 0.0
    %v704 = vmax.f32 %v672, 0.0
    %v705 = vmax.f32 %v673, 0.0
    %v706 = vmax.f32 %v674, 0.0
    %v707 = vmax.f32 %v675, 0.0
    %v708 = vmax.f32 %v676, 0.0
    %v709 = vmax.f32 %v677, 0.0
    %v710 = vmax.f32 %v678, 0.0
    %v711 = vmax.f32 %v679, 0.0
    %v712 = vmax.f32 %v680, 0.0
    %v713 = vmax.f32 %v681, 0.0
    %v714 = vmax.f32 %v682, 0.0
    %v715 = vmax.f32 %v683, 0.0
    %v716 = vmax.f32 %v684, 0.0
    %v717 = vmax.f32 %v685, 0.0
    %v718 = vmax.f32 %v686, 0.0
    %v719 = vmax.f32 %v687, 0.0
    %v720 = vmax.f32 %v688, 0.0
    %v721 = vmax.f32 %v689, 0.0
    %v722 = vmax.f32 %v690, 0.0
    %v723 = vmax.f32 %v691, 0.0
    %v724 = vmax.f32 %v692, 0.0
    %v725 = vmax.f32 %v693, 0.0
    %v726 = vmax.f32 %v694, 0.0
    %v727 = vmax.f32 %v695, 0.0
    %v728 = vmax.f32 %v696, 0.0
    %v729 = vmax.f32 %v697, 0.0
    %v730 = vmax.f32 %v698, 0.0
    %v731 = vmax.f32 %v699, 0.0
    %v732 = vmax.f32 %v700, 0.0
    %v733 = vpack.c.bf16 %v703, %v701
    %v734 = vpack.c.bf16 %v704, %v702
    %v735 = vpack.c.bf16 %v707, %v705
    %v736 = vpack.c.bf16 %v708, %v706
    %v737 = vpack.c.bf16 %v711, %v709
    %v738 = vpack.c.bf16 %v712, %v710
    %v739 = vpack.c.bf16 %v715, %v713
    %v740 = vpack.c.bf16 %v716, %v714
    %v741 = vpack.c.bf16 %v719, %v717
    %v742 = vpack.c.bf16 %v720, %v718
    %v743 = vpack.c.bf16 %v723, %v721
    %v744 = vpack.c.bf16 %v724, %v722
    %v745 = vpack.c.bf16 %v727, %v725
    %v746 = vpack.c.bf16 %v728, %v726
    %v747 = vpack.c.bf16 %v731, %v729
    %v748 = vpack.c.bf16 %v732, %v730
    %v749 = vld [vmem:[%s3] sm:$0xf]
    %v750 = vld [vmem:[%s3 + $0x4] sm:$0xf]
    %v751 = vld [vmem:[%s3 + $0x8] sm:$0xf]
    %v752 = vld [vmem:[%s3 + $0xc] sm:$0xf]
    %v753 = vld [vmem:[%s3 + $0x10] sm:$0xf]
    %v754 = vld [vmem:[%s3 + $0x14] sm:$0xf]
    %v755 = vld [vmem:[%s3 + $0x18] sm:$0xf]
    %v756 = vld [vmem:[%s3 + $0x1c] sm:$0xf]
    %v757 = vld [vmem:[%s4] sm:$0xff]
    %v758 = vld [vmem:[%s4 + $0x8] sm:$0xff]
    %v759 = vld [vmem:[%s4 + $0x10] sm:$0xff]
    %v760 = vld [vmem:[%s4 + $0x18] sm:$0xff]
    %v761 = vld [vmem:[%s4 + $0x20] sm:$0xff]
    %v762 = vld [vmem:[%s4 + $0x28] sm:$0xff]
    %v763 = vld [vmem:[%s4 + $0x30] sm:$0xff]
    %v764 = vld [vmem:[%s4 + $0x38] sm:$0xff]
    %766 = vset.pattern.permute.xlu0 0
    %767 = vperm.xlu0 %766, %v757
    %v768 = vpop.permute.xlu0 %767
    %771 = vset.pattern.permute.xlu0 0
    %772 = vperm.xlu0 %771, %v758
    %v773 = vpop.permute.xlu0 %772
    %776 = vset.pattern.permute.xlu0 0
    %777 = vperm.xlu0 %776, %v759
    %v778 = vpop.permute.xlu0 %777
    %781 = vset.pattern.permute.xlu0 0
    %782 = vperm.xlu0 %781, %v760
    %v783 = vpop.permute.xlu0 %782
    %786 = vset.pattern.permute.xlu0 0
    %787 = vperm.xlu0 %786, %v761
    %v788 = vpop.permute.xlu0 %787
    %791 = vset.pattern.permute.xlu0 0
    %792 = vperm.xlu0 %791, %v762
    %v793 = vpop.permute.xlu0 %792
    %796 = vset.pattern.permute.xlu0 0
    %797 = vperm.xlu0 %796, %v763
    %v798 = vpop.permute.xlu0 %797
    %801 = vset.pattern.permute.xlu0 0
    %802 = vperm.xlu0 %801, %v764
    %v803 = vpop.permute.xlu0 %802
    %v813 = vunpack.c.l.b16 %v749
    %v814 = vunpack.c.l.b16 %v750
    %v815 = vunpack.c.l.b16 %v751
    %v816 = vunpack.c.l.b16 %v752
    %v817 = vunpack.c.l.b16 %v753
    %v818 = vunpack.c.l.b16 %v754
    %v819 = vunpack.c.l.b16 %v755
    %v820 = vunpack.c.l.b16 %v756
    %v821 = vpack.c.b16 %v814, %v813
    %v822 = vpack.c.b16 %v816, %v815
    %v823 = vpack.c.b16 %v818, %v817
    %v824 = vpack.c.b16 %v820, %v819
    %829 = vmatpush.bf16.msra.mxu0 %v747
    %830 = vmatpush.bf16.msra.mxu0 %v745
    %831 = vmatpush.bf16.msra.mxu0 %v743
    %832 = vmatpush.bf16.msra.mxu0 %v741
    %833 = vmatpush.bf16.msra.mxu0 %v739
    %834 = vmatpush.bf16.msra.mxu0 %v737
    %835 = vmatpush.bf16.msra.mxu0 %v735
    %836 = vmatpush.bf16.msra.mxu0 %v733
    %837 = vmatmul.bf16.gmra.mxu0 %v821
    %v838 = vpop.f32.mrf.mxu0
    %v839 = vadd.f32 %v768, %v838
    %v840 = vpop.f32.mrf.mxu0
    %v841 = vadd.f32 %v773, %v840
    %842 = vmatmul.bf16.gmra.mxu0 %v822
    %v843 = vpop.f32.mrf.mxu0
    %v844 = vadd.f32 %v778, %v843
    %v845 = vpop.f32.mrf.mxu0
    %v846 = vadd.f32 %v783, %v845
    %847 = vmatmul.bf16.gmra.mxu0 %v823
    %v848 = vpop.f32.mrf.mxu0
    %v849 = vadd.f32 %v788, %v848
    %v850 = vpop.f32.mrf.mxu0
    %v851 = vadd.f32 %v793, %v850
    %852 = vmatmul.bf16.gmra.mxu0 %v824
    %v853 = vpop.f32.mrf.mxu0
    %v854 = vadd.f32 %v798, %v853
    %v855 = vpop.f32.mrf.mxu0
    %v856 = vadd.f32 %v803, %v855
    %857 = vdwg.mxu0
    %858 = vmatpush.bf16.msra.mxu0 %v748
    %859 = vmatpush.bf16.msra.mxu0 %v746
    %860 = vmatpush.bf16.msra.mxu0 %v744
    %861 = vmatpush.bf16.msra.mxu0 %v742
    %862 = vmatpush.bf16.msra.mxu0 %v740
    %863 = vmatpush.bf16.msra.mxu0 %v738
    %864 = vmatpush.bf16.msra.mxu0 %v736
    %865 = vmatpush.bf16.msra.mxu0 %v734
    %866 = vmatmul.bf16.gmra.mxu0 %v821
    %v867 = vpop.f32.mrf.mxu0
    %v868 = vadd.f32 %v768, %v867
    %v869 = vpop.f32.mrf.mxu0
    %v870 = vadd.f32 %v773, %v869
    %871 = vmatmul.bf16.gmra.mxu0 %v822
    %v872 = vpop.f32.mrf.mxu0
    %v873 = vadd.f32 %v778, %v872
    %v874 = vpop.f32.mrf.mxu0
    %v875 = vadd.f32 %v783, %v874
    %876 = vmatmul.bf16.gmra.mxu0 %v823
    %v877 = vpop.f32.mrf.mxu0
    %v878 = vadd.f32 %v788, %v877
    %v879 = vpop.f32.mrf.mxu0
    %v880 = vadd.f32 %v793, %v879
    %881 = vmatmul.bf16.gmra.mxu0 %v824
    %v882 = vpop.f32.mrf.mxu0
    %v883 = vadd.f32 %v798, %v882
    %v884 = vpop.f32.mrf.mxu0
    %v885 = vadd.f32 %v803, %v884
    %886 = vdwg.mxu0
    %v887 = vmax.f32 %v839, 0.0
    %v888 = vmax.f32 %v868, 0.0
    %v889 = vmax.f32 %v841, 0.0
    %v890 = vmax.f32 %v870, 0.0
    %v891 = vmax.f32 %v844, 0.0
    %v892 = vmax.f32 %v873, 0.0
    %v893 = vmax.f32 %v846, 0.0
    %v894 = vmax.f32 %v875, 0.0
    %v895 = vmax.f32 %v849, 0.0
    %v896 = vmax.f32 %v878, 0.0
    %v897 = vmax.f32 %v851, 0.0
    %v898 = vmax.f32 %v880, 0.0
    %v899 = vmax.f32 %v854, 0.0
    %v900 = vmax.f32 %v883, 0.0
    %v901 = vmax.f32 %v856, 0.0
    %v902 = vmax.f32 %v885, 0.0
    %v903 = vpack.c.bf16 %v889, %v887
    %v904 = vpack.c.bf16 %v890, %v888
    %v905 = vpack.c.bf16 %v893, %v891
    %v906 = vpack.c.bf16 %v894, %v892
    %v907 = vpack.c.bf16 %v897, %v895
    %v908 = vpack.c.bf16 %v898, %v896
    %v909 = vpack.c.bf16 %v901, %v899
    %v910 = vpack.c.bf16 %v902, %v900
    %v911 = vld [vmem:[%s5] sm:$0xf]
    %v912 = vld [vmem:[%s5 + $0x4] sm:$0xf]
    %v913 = vld [vmem:[%s5 + $0x8] sm:$0xf]
    %v914 = vld [vmem:[%s5 + $0xc] sm:$0xf]
    %v915 = vld [vmem:[%s6] sm:$0xff]
    %v916 = vld [vmem:[%s6 + $0x8] sm:$0xff]
    %v917 = vld [vmem:[%s6 + $0x10] sm:$0xff]
    %v918 = vld [vmem:[%s6 + $0x18] sm:$0xff]
    %920 = vset.pattern.permute.xlu0 0
    %921 = vperm.xlu0 %920, %v915
    %v922 = vpop.permute.xlu0 %921
    %925 = vset.pattern.permute.xlu0 0
    %926 = vperm.xlu0 %925, %v916
    %v927 = vpop.permute.xlu0 %926
    %930 = vset.pattern.permute.xlu0 0
    %931 = vperm.xlu0 %930, %v917
    %v932 = vpop.permute.xlu0 %931
    %935 = vset.pattern.permute.xlu0 0
    %936 = vperm.xlu0 %935, %v918
    %v937 = vpop.permute.xlu0 %936
    %v943 = vunpack.c.l.b16 %v911
    %v944 = vunpack.c.l.b16 %v912
    %v945 = vunpack.c.l.b16 %v913
    %v946 = vunpack.c.l.b16 %v914
    %v947 = vpack.c.b16 %v944, %v943
    %v948 = vpack.c.b16 %v946, %v945
    %vm949 = vcmask 523264
    %v951 = vsel %vm949, %v947, 0
    %v954 = vsel %vm949, %v948, 0
    %956 = vmatpush.bf16.msra.mxu0 0
    %957 = vmatpush.bf16.msra.mxu0 0
    %958 = vmatpush.bf16.msra.mxu0 0
    %959 = vmatpush.bf16.msra.mxu0 0
    %960 = vmatpush.bf16.msra.mxu0 %v909
    %961 = vmatpush.bf16.msra.mxu0 %v907
    %962 = vmatpush.bf16.msra.mxu0 %v905
    %963 = vmatpush.bf16.msra.mxu0 %v903
    %964 = vmatmul.bf16.gmra.mxu0 %v951
    %v965 = vpop.f32.mrf.mxu0
    %v966 = vadd.f32 %v922, %v965
    %v967 = vpop.f32.mrf.mxu0
    %v968 = vadd.f32 %v927, %v967
    %969 = vmatmul.bf16.gmra.mxu0 %v954
    %v970 = vpop.f32.mrf.mxu0
    %v971 = vadd.f32 %v932, %v970
    %v972 = vpop.f32.mrf.mxu0
    %v973 = vadd.f32 %v937, %v972
    %974 = vdwg.mxu0
    %975 = vmatpush.bf16.msra.mxu0 0
    %976 = vmatpush.bf16.msra.mxu0 0
    %977 = vmatpush.bf16.msra.mxu0 0
    %978 = vmatpush.bf16.msra.mxu0 0
    %979 = vmatpush.bf16.msra.mxu0 %v910
    %980 = vmatpush.bf16.msra.mxu0 %v908
    %981 = vmatpush.bf16.msra.mxu0 %v906
    %982 = vmatpush.bf16.msra.mxu0 %v904
    %983 = vmatmul.bf16.gmra.mxu0 %v951
    %v984 = vpop.f32.mrf.mxu0
    %v985 = vadd.f32 %v922, %v984
    %v986 = vpop.f32.mrf.mxu0
    %v987 = vadd.f32 %v927, %v986
    %988 = vmatmul.bf16.gmra.mxu0 %v954
    %v989 = vpop.f32.mrf.mxu0
    %v990 = vadd.f32 %v932, %v989
    %v991 = vpop.f32.mrf.mxu0
    %v992 = vadd.f32 %v937, %v991
    %993 = vdwg.mxu0
    %v994 = vmax.f32 %v966, 0.0
    %v995 = vmax.f32 %v985, 0.0
    %v996 = vmax.f32 %v968, 0.0
    %v997 = vmax.f32 %v987, 0.0
    %v998 = vmax.f32 %v971, 0.0
    %v999 = vmax.f32 %v990, 0.0
    %v1000 = vmax.f32 %v973, 0.0
    %v1001 = vmax.f32 %v992, 0.0
    %v1002 = vpack.c.bf16 %v996, %v994
    %v1003 = vpack.c.bf16 %v997, %v995
    %v1004 = vpack.c.bf16 %v1000, %v998
    %v1005 = vpack.c.bf16 %v1001, %v999
    %v1006 = vld [vmem:[%s7] sm:$0x3]
    %v1007 = vld [vmem:[%s8] sm:$0xf]
    %1009 = vset.pattern.permute.xlu0 0
    %1010 = vperm.xlu0 %1009, %v1007
    %v1011 = vpop.permute.xlu0 %1010
    %vm1013 = vcmask 261120
    %v1015 = vsel %vm1013, %v1006, 0
    %1017 = vmatpush.bf16.msra.mxu0 0
    %1018 = vmatpush.bf16.msra.mxu0 0
    %1019 = vmatpush.bf16.msra.mxu0 0
    %1020 = vmatpush.bf16.msra.mxu0 0
    %1021 = vmatpush.bf16.msra.mxu0 0
    %1022 = vmatpush.bf16.msra.mxu0 0
    %1023 = vmatpush.bf16.msra.mxu0 %v1004
    %1024 = vmatpush.bf16.msra.mxu0 %v1002
    %1025 = vmatmul.bf16.gmra.mxu0 %v1015
    %v1026 = vpop.f32.mrf.mxu0
    %v1027 = vadd.f32 %v1011, %v1026
    %v1028 = vpop.f32.mrf.mxu0
    %1029 = vdwg.mxu0
    %1030 = vmatpush.bf16.msra.mxu0 0
    %1031 = vmatpush.bf16.msra.mxu0 0
    %1032 = vmatpush.bf16.msra.mxu0 0
    %1033 = vmatpush.bf16.msra.mxu0 0
    %1034 = vmatpush.bf16.msra.mxu0 0
    %1035 = vmatpush.bf16.msra.mxu0 0
    %1036 = vmatpush.bf16.msra.mxu0 %v1005
    %1037 = vmatpush.bf16.msra.mxu0 %v1003
    %1038 = vmatmul.bf16.gmra.mxu0 %v1015
    %v1039 = vpop.f32.mrf.mxu0
    %v1040 = vadd.f32 %v1011, %v1039
    %v1041 = vpop.f32.mrf.mxu0
    %1042 = vdwg.mxu0
    %v1045 = vrot.slane %v1040, 4
    %vm1046 = vcmask 1043456
    %v1047 = vsel %vm1046, %v1027, %v1045
    %1049 = vst [vmem:[#allocation2] sm:$0xff] %v1047
    // Predicated region
    $region38: #{tpu_custom_call.1} parent=1 // pred_check
      _
    $region39: #{tpu_custom_call.1} parent=1 // pred_check_branch
      %1051 = sbr.rel (0) target = $region41
    $region40: #{tpu_custom_call.1} parent=1 // pred_region
      %1053 = vsyncadd [#allocation3], 0
      %s1055 = sshll.u32 [#allocation2], 4
      %s1056 = int_to_ptr.vmem [resolvable:$true] %s1055
      %s1057 = sshll.u32 %s9, 4
      %s1058 = int_to_ptr.hbm [resolvable:$true] %s1057
      %1060 = dma.vmem_to_hbm [thread:$0]  %s1056, 128, %s1058, [#allocation3]
    $region41: #{tpu_custom_call.1} parent=1 // pred_fallthru
      _
    // Predicated region
    $region42: #{tpu_custom_call.1} parent=1 // pred_check
      _
    $region43: #{tpu_custom_call.1} parent=1 // pred_check_branch
      %1062 = sbr.rel (0) target = $region45
    $region44: #{tpu_custom_call.1} parent=1 // pred_region
      %1064 = dma.done [#allocation3], 128
    $region45: #{tpu_custom_call.1} parent=1 // pred_fallthru
      _
    %1065 = vsyncpa [#allocation3], 1

</llo_original>
